<compile_context>
chip_gen: v6e
topology: v6e:2x2x1
jax: 0.10.0
libtpu: 0.0.40
codegen_flags: <defaults>
</compile_context>

<pallas_src>
import jax
import jax.numpy as jnp
from jax.experimental import pallas as pl
from jax.experimental.pallas import tpu as pltpu


def _noise_injection_kernel(w_ref, x_ref, noise_ref, out_ref):
    # w_ref     : SMEM (1,)          learned scalar `weight`
    # x_ref     : VMEM (1, C, THW)   input tile, spatial on lanes (lane-dense)
    # noise_ref : VMEM (1, 1, THW)   per-batch noise tile, broadcast over C
    # out_ref   : VMEM (1, C, THW)
    w = w_ref[0]
    out_ref[...] = x_ref[...] + w * noise_ref[...]


def _pick_spatial_tile(hw, c, itemsize, budget_bytes):
    """Largest halving divisor of hw that stays a multiple of 128 and keeps one
    (C, thw) input block within `budget_bytes`.  If the flattened spatial axis
    is not 128-aligned, use the full extent (block == full dim is allowed)."""
    if hw % 128 != 0:
        return hw
    thw = hw
    # thw % 256 == 0 guarantees thw//2 still divides hw and is a multiple of 128.
    while c * thw * itemsize > budget_bytes and thw % 256 == 0:
        thw //= 2
    return thw


def noise_injection(x, weight, noise=None, *, key=None, tile_budget_bytes=2 << 20):
    """out = x + weight * noise, with noise of shape (N, 1, H, W)."""
    N, C, H, W = x.shape
    if noise is None:
        if key is None:
            raise ValueError("noise=None requires a PRNG `key` to draw randn noise")
        # TODO(synk): PyTorch draws from torch's global RNG; here we use a JAX key
        # (same N(0,1) distribution, different stream).
        noise = jax.random.normal(key, (N, 1, H, W), x.dtype)
    assert noise.shape == (N, 1, H, W), noise.shape

    HW = H * W
    itemsize = jnp.dtype(x.dtype).itemsize

    # Zero-copy layout: collapse (H, W) onto the lane axis; channels stay on
    # sublanes.  No transposes anywhere.
    x3 = x.reshape(N, C, HW)
    n3 = noise.reshape(N, 1, HW)
    w1 = jnp.asarray(weight, dtype=x.dtype).reshape(-1)[:1]   # (1,) scalar in SMEM

    thw = _pick_spatial_tile(HW, C, itemsize, tile_budget_bytes)
    grid = (N, HW // thw)

    cost = pl.CostEstimate(
        flops=2 * int(x.size),                      # one mul + one add per element
        transcendentals=0,
        bytes_accessed=int(2 * x.size * itemsize + noise.size * itemsize),
    )

    out3 = pl.pallas_call(
        _noise_injection_kernel,
        out_shape=jax.ShapeDtypeStruct((N, C, HW), x.dtype),
        grid_spec=pltpu.PrefetchScalarGridSpec(
            num_scalar_prefetch=0,
            grid=grid,
            in_specs=[
                pl.BlockSpec(memory_space=pltpu.MemorySpace.SMEM),      # weight (1,)
                pl.BlockSpec((1, C, thw), lambda n, t: (n, 0, t)),      # x tile
                pl.BlockSpec((1, 1, thw), lambda n, t: (n, 0, t)),      # noise tile
            ],
            out_specs=pl.BlockSpec((1, C, thw), lambda n, t: (n, 0, t)),
        ),
        compiler_params=pltpu.CompilerParams(
            dimension_semantics=("parallel", "parallel")),
        cost_estimate=cost,
    )(w1, x3, n3)

    return out3.reshape(N, C, H, W)


def _reference(x, weight, noise):
    """Plain-JAX reference of NoiseInjection.forward."""
    return x + jnp.asarray(weight, x.dtype).reshape(()) * noise


if __name__ == "__main__":
    key = jax.random.PRNGKey(0)
    kx, kn, kw = jax.random.split(key, 3)

    N, C, H, W = 2, 4, 16, 16
    x = jax.random.normal(kx, (N, C, H, W), jnp.float32)
    noise = jax.random.normal(kn, (N, 1, H, W), jnp.float32)

    # PyTorch initializes weight to zeros; use a nonzero deterministic value so
    # the broadcast-add path is actually exercised, then also check weight=0.
    weight = jnp.float32(0.35)

    out = jax.block_until_ready(noise_injection(x, weight, noise))
    ref = jax.block_until_ready(_reference(x, weight, noise))
    assert out.shape == (N, C, H, W)
    assert jnp.allclose(out, ref, atol=1e-6, rtol=1e-6), float(jnp.max(jnp.abs(out - ref)))

    # weight == 0 (PyTorch's init): output must equal the input.
    out0 = jax.block_until_ready(noise_injection(x, jnp.float32(0.0), noise))
    assert jnp.allclose(out0, x, atol=0.0, rtol=0.0)

    # noise=None path: noise drawn inside the wrapper from a key.
    out_rand = jax.block_until_ready(noise_injection(x, weight, key=kw))
    assert out_rand.shape == (N, C, H, W)

    print("KERNEL_OK")
</pallas_src>

<mosaic_0001>
module attributes {stable_mosaic.version = 11 : i64} {
  func.func @_noise_injection_kernel(%arg0: i32, %arg1: i32, %arg2: memref<1xf32, #tpu.memory_space<smem>>, %arg3: memref<1x4x256xf32, #tpu.memory_space<vmem>>, %arg4: memref<1x1x256xf32, #tpu.memory_space<vmem>>, %arg5: memref<1x4x256xf32, #tpu.memory_space<vmem>>) attributes {dimension_semantics = [#tpu.dimension_semantics<parallel>, #tpu.dimension_semantics<parallel>], iteration_bounds = array<i64: 2, 1>, scalar_prefetch = 0 : i64, scratch_operands = 0 : i64, tpu.core_type = #tpu.core_type<tc>, window_params = [{transform_indices = @transform_0, window_bounds = array<i64: 1>}, {transform_indices = @transform_1, window_bounds = array<i64: 1, 4, 256>}, {transform_indices = @transform_2, window_bounds = array<i64: 1, 1, 256>}, {transform_indices = @transform_3, window_bounds = array<i64: 1, 4, 256>}]} {
    %c0 = arith.constant 0 : index
    %0 = memref.load %arg2[%c0] : memref<1xf32, #tpu.memory_space<smem>>
    %c0_0 = arith.constant 0 : index
    %c0_1 = arith.constant 0 : index
    %c0_2 = arith.constant 0 : index
    %1 = vector.load %arg3[%c0_0, %c0_1, %c0_2] : memref<1x4x256xf32, #tpu.memory_space<vmem>>, vector<1x4x256xf32>
    %c0_3 = arith.constant 0 : index
    %c0_4 = arith.constant 0 : index
    %c0_5 = arith.constant 0 : index
    %2 = vector.load %arg4[%c0_3, %c0_4, %c0_5] : memref<1x1x256xf32, #tpu.memory_space<vmem>>, vector<1x1x256xf32>
    %3 = vector.broadcast %0 : f32 to vector<1x1x256xf32>
    %4 = arith.mulf %3, %2 : vector<1x1x256xf32>
    %5 = vector.broadcast %4 : vector<1x1x256xf32> to vector<1x4x256xf32>
    %6 = arith.addf %1, %5 : vector<1x4x256xf32>
    %c0_6 = arith.constant 0 : index
    %c0_7 = arith.constant 0 : index
    %c0_8 = arith.constant 0 : index
    %7 = vector.load %arg5[%c0_6, %c0_7, %c0_8] : memref<1x4x256xf32, #tpu.memory_space<vmem>>, vector<1x4x256xf32>
    tpu.vector_store %arg5[%c0_6, %c0_7, %c0_8], %6 {strides = array<i32>} : memref<1x4x256xf32, #tpu.memory_space<vmem>>, vector<1x4x256xf32>,
    return
  }
  func.func @transform_0(%arg0: i32, %arg1: i32) -> i32 {
    %c0_i32 = arith.constant 0 : i32
    %c0_i32_0 = arith.constant 0 : i32
    return %c0_i32 : i32
  }
  func.func @transform_1(%arg0: i32, %arg1: i32) -> (i32, i32, i32) {
    %c0_i32 = arith.constant 0 : i32
    %c0_i32_0 = arith.constant 0 : i32
    return %arg0, %c0_i32, %arg1 : i32, i32, i32
  }
  func.func @transform_2(%arg0: i32, %arg1: i32) -> (i32, i32, i32) {
    %c0_i32 = arith.constant 0 : i32
    %c0_i32_0 = arith.constant 0 : i32
    return %arg0, %c0_i32, %arg1 : i32, i32, i32
  }
  func.func @transform_3(%arg0: i32, %arg1: i32) -> (i32, i32, i32) {
    %c0_i32 = arith.constant 0 : i32
    %c0_i32_0 = arith.constant 0 : i32
    return %arg0, %c0_i32, %arg1 : i32, i32, i32
  }
}

</mosaic_0001>

<llo_original>
// kernel: tpu_custom_call.1
$region0: #{tpu_custom_call.1}
  #allocation0 [shape = 'u32[]', space=smem, size = 0x4, offset = 0x4, fixed_abs, tag = 'smem constant byte address 0x4 - core index']
  #allocation1 [shape = 'u32[144,128]{1,0:T(1,128)}', space=vmem, size = 0x12000, scoped, tag = 'internal scratch']
  #allocation2 [shape = 'f32[1]{0:T(128)S(6)}', space=smem, size = 0x200, scoped, tag = 'scoped memory for tpu_custom_call.1']
  %s0 = inlined_call_operand.<no memory space> [shape: f32[1], index: 0, kind: input, shape index: {}]
  %s1 = inlined_call_operand.hbm [shape: f32[2,4,256], index: 1, kind: input, shape index: {}]
  %s2 = inlined_call_operand.hbm [shape: f32[2,1,256], index: 2, kind: input, shape index: {}]
  %s3 = inlined_call_operand.hbm [shape: f32[2,4,256], index: 3, kind: output, shape index: {}]
  %s4 = sld [smem:[#allocation0]]
  $region53: #{tpu_custom_call.1} parent=0
    _
  %s6 = ssub.s32 1, %s4
  %s7 = scalar_select 0, %s6, %s4
  %8 = sst [smem:[#allocation2]] %s0
  $region1: #{tpu_custom_call.1} parent=0
    #allocation3 [shape = 'u8[8192]{0}', space=vmem, size = 0x2000, scoped, tag = 'input window, operand 1']
    #allocation4 [shape = 's32[2]{0}', space=sflag, size = 0x8, scoped, tag = 'scoped memory for tpu_custom_call.1']
    #allocation5 [shape = 's32[2]{0}', space=sflag, size = 0x8, scoped, tag = 'scoped memory for tpu_custom_call.1']
    #allocation6 [shape = 'u8[2048]{0}', space=vmem, size = 0x800, scoped, tag = 'input window, operand 2']
    #allocation7 [shape = 's32[2]{0}', space=sflag, size = 0x8, scoped, tag = 'scoped memory for tpu_custom_call.1']
    #allocation8 [shape = 'u8[8192]{0}', space=vmem, size = 0x2000, scoped, tag = 'output window, operand 0']
    %9 = vsyncpa [#allocation4], 0
    %s10 = scalar_lea.sflag [#allocation4], 1
    %11 = vsyncpa %s10, 0
    %12 = vsyncpa [#allocation7], 0
    %s13 = scalar_lea.sflag [#allocation7], 1
    %14 = vsyncpa %s13, 0
    %15 = vsyncpa [#allocation5], 0
    %s16 = scalar_lea.sflag [#allocation5], 1
    %17 = vsyncpa %s16, 0
    loop: start=0, step=1, limit=4
    $region2: #{tpu_custom_call.1} parent=1 // loop_pre_header
      _
    $region3: #{tpu_custom_call.1} parent=1 // loop_header
      %s19 = sphi 0, %s23
      %p20 = scmp.ge.s32.totalorder %s19, 4
      %s26 = sphi 0, %s38
      %s27 = sphi 0, %s34
      %s28 = sphi 0, %s26
      %s29 = sphi 0, %s27
      %s30 = sphi 0, %s28
      %s31 = sphi 0, %s29
      %s39 = sphi 0, %s39
      %s41 = sphi 0, %s39
      %s42 = sphi 0, %s41
      %s56 = sphi 0, %s42
      %s64 = sphi 0, %s66
      %s67 = sphi 0, %s64
      %s68 = sphi 0, %s67
      %s84 = sphi 0, %s68
      %s92 = sphi 0, %s94
      %s95 = sphi 0, %s92
      %s96 = sphi 0, %s95
      %s112 = sphi 0, %s96
      %s120 = sphi 0, %s122
      %s123 = sphi 0, %s120
      %s124 = sphi 0, %s123
      %s140 = sphi 0, %s124
    $region4: #{tpu_custom_call.1} parent=1 // loop_header_branch
      %22 = sbr.rel (%p20) target = $region8
    $region5: #{tpu_custom_call.1} parent=1 // loop_body
      %s24 = ssub.s32 %s19, 1
      %s25 = ssub.s32 %s19, 2
      %s32 = sadd.s32 1, %s27
      %p33 = scmp.ge.s32.totalorder %s32, 1
      %s34 = scalar_select %p33, 0, %s32
      %s35 = sadd.s32 1, %s26
      %s36 = scalar_select %p33, %s35, %s26
      %p37 = scmp.ge.s32.totalorder %s36, 2
      %s38 = scalar_select %p37, 0, %s36
      %s40 = sadd.s32 %s39, 1
      %p43 = scmp.eq.s32.totalorder %s19, 1
      %p44 = scmp.ne.s32.totalorder %s39, %s41
      %p45 = scmp.eq.s32.totalorder %s19, 0
      %p46 = por %p44, %p45
      %p47 = scmp.ne.s32.totalorder %s39, %s41
      %p48 = scmp.eq.s32.totalorder %s24, 1
      %p49 = por %p47, %p48
      %p50 = scmp.ne.s32.totalorder %s41, %s42
      %p51 = scmp.eq.s32.totalorder %s24, 0
      %p52 = por %p50, %p51
      %p53 = scmp.ne.s32.totalorder %s41, %s42
      %p54 = scmp.eq.s32.totalorder %s25, 1
      %p55 = por %p53, %p54
      %p57 = scmp.ne.s32.totalorder %s42, %s56
      %p58 = scmp.eq.s32.totalorder %s25, 0
      %p59 = por %p57, %p58
      %s60 = ssub.s32 %s26, %s38
      %s61 = ssub.s32 %s27, %s34
      %s62 = sor.u32 %s60, %s61
      %p63 = scmp.eq.s32.totalorder %s62, 0
      %s65 = sadd.s32 %s64, 1
      %s66 = scalar_select %p63, %s64, %s65
      %p69 = pneg %p63
      %p70 = scmp.eq.s32.totalorder %s19, 1
      %p71 = por %p69, %p70
      %p72 = scmp.ne.s32.totalorder %s64, %s67
      %p73 = scmp.eq.s32.totalorder %s19, 0
      %p74 = por %p72, %p73
      %p75 = scmp.ne.s32.totalorder %s64, %s67
      %p76 = scmp.eq.s32.totalorder %s24, 1
      %p77 = por %p75, %p76
      %p78 = scmp.ne.s32.totalorder %s67, %s68
      %p79 = scmp.eq.s32.totalorder %s24, 0
      %p80 = por %p78, %p79
      %p81 = scmp.ne.s32.totalorder %s67, %s68
      %p82 = scmp.eq.s32.totalorder %s25, 1
      %p83 = por %p81, %p82
      %p85 = scmp.ne.s32.totalorder %s68, %s84
      %p86 = scmp.eq.s32.totalorder %s25, 0
      %p87 = por %p85, %p86
      %s88 = ssub.s32 %s26, %s38
      %s89 = ssub.s32 %s27, %s34
      %s90 = sor.u32 %s88, %s89
      %p91 = scmp.eq.s32.totalorder %s90, 0
      %s93 = sadd.s32 %s92, 1
      %s94 = scalar_select %p91, %s92, %s93
      %p97 = pneg %p91
      %p98 = scmp.eq.s32.totalorder %s19, 1
      %p99 = por %p97, %p98
      %p100 = scmp.ne.s32.totalorder %s92, %s95
      %p101 = scmp.eq.s32.totalorder %s19, 0
      %p102 = por %p100, %p101
      %p103 = scmp.ne.s32.totalorder %s92, %s95
      %p104 = scmp.eq.s32.totalorder %s24, 1
      %p105 = por %p103, %p104
      %p106 = scmp.ne.s32.totalorder %s95, %s96
      %p107 = scmp.eq.s32.totalorder %s24, 0
      %p108 = por %p106, %p107
      %p109 = scmp.ne.s32.totalorder %s95, %s96
      %p110 = scmp.eq.s32.totalorder %s25, 1
      %p111 = por %p109, %p110
      %p113 = scmp.ne.s32.totalorder %s96, %s112
      %p114 = scmp.eq.s32.totalorder %s25, 0
      %p115 = por %p113, %p114
      %s116 = ssub.s32 %s26, %s38
      %s117 = ssub.s32 %s27, %s34
      %s118 = sor.u32 %s116, %s117
      %p119 = scmp.eq.s32.totalorder %s118, 0
      %s121 = sadd.s32 %s120, 1
      %s122 = scalar_select %p119, %s120, %s121
      %p125 = pneg %p119
      %p126 = scmp.eq.s32.totalorder %s19, 1
      %p127 = por %p125, %p126
      %p128 = scmp.ne.s32.totalorder %s120, %s123
      %p129 = scmp.eq.s32.totalorder %s19, 0
      %p130 = por %p128, %p129
      %p131 = scmp.ne.s32.totalorder %s120, %s123
      %p132 = scmp.eq.s32.totalorder %s24, 1
      %p133 = por %p131, %p132
      %p134 = scmp.ne.s32.totalorder %s123, %s124
      %p135 = scmp.eq.s32.totalorder %s24, 0
      %p136 = por %p134, %p135
      %p137 = scmp.ne.s32.totalorder %s123, %s124
      %p138 = scmp.eq.s32.totalorder %s25, 1
      %p139 = por %p137, %p138
      %p141 = scmp.ne.s32.totalorder %s124, %s140
      %p142 = scmp.eq.s32.totalorder %s25, 0
      %p143 = por %p141, %p142
      %p144 = scmp.le.s32.totalorder 1, %s19
      %p145 = scmp.lt.s32.totalorder %s19, 3
      %p146 = pnand %p144, %p145
      %p147 = pneg %p146
      // Predicated region
      $region9: #{tpu_custom_call.1} parent=5 // pred_check
        _
      $region10: #{tpu_custom_call.1} parent=5 // pred_check_branch
        %149 = sbr.rel (%p146) target = $region12
      $region11: #{tpu_custom_call.1} parent=5 // pred_region
        %s150 = ssub.s32 %s19, 1
        // Predicated region
        $region13: #{tpu_custom_call.1} parent=11 // pred_check
          %p151 = pneg %p52
        $region14: #{tpu_custom_call.1} parent=11 // pred_check_branch
          %153 = sbr.rel (%p151) target = $region16
        $region15: #{tpu_custom_call.1} parent=11 // pred_region
          _
        $region16: #{tpu_custom_call.1} parent=11 // pred_fallthru
          _
      $region12: #{tpu_custom_call.1} parent=5 // pred_fallthru
        _
      %p154 = scmp.lt.s32.totalorder %s19, 2
      // Predicated region
      $region17: #{tpu_custom_call.1} parent=5 // pred_check
        %p155 = pneg %p154
      $region18: #{tpu_custom_call.1} parent=5 // pred_check_branch
        %157 = sbr.rel (%p155) target = $region20
      $region19: #{tpu_custom_call.1} parent=5 // pred_region
        // Predicated region
        $region21: #{tpu_custom_call.1} parent=19 // pred_check
          %p158 = pneg %p74
        $region22: #{tpu_custom_call.1} parent=19 // pred_check_branch
          %160 = sbr.rel (%p158) target = $region24
        $region23: #{tpu_custom_call.1} parent=19 // pred_region
          %s161 = sand.u32 %s64, 1
          %s162 = scalar_lea.sflag [#allocation4], %s161
          %s163 = sand.u32 %s64, 1
          %s164 = smul.addr %s163, 8
          %s165 = scalar_lea.vmem [#allocation3], %s164
          %s166 = smul.u32 2, %s27
          %s168 = ssub.s32 128, 128
          %169 = vsyncadd %s162, %s168
          %s170 = smul.addr %s26, 2
          %s171 = sadd.s32 %s166, %s170
          %s172 = smul.addr %s171, 64
          %s173 = scalar_lea.hbm %s1, %s172
          %s175 = sshll.u32 %s165, 4
          %s176 = int_to_ptr.vmem [resolvable:$true] %s175
          %178 = dma.hbm_to_vmem [thread:$0]  %s173, 128, %s176, %s162
        $region24: #{tpu_custom_call.1} parent=19 // pred_fallthru
          _
        // Predicated region
        $region25: #{tpu_custom_call.1} parent=19 // pred_check
          %p179 = pneg %p102
        $region26: #{tpu_custom_call.1} parent=19 // pred_check_branch
          %181 = sbr.rel (%p179) target = $region28
        $region27: #{tpu_custom_call.1} parent=19 // pred_region
          %s182 = sand.u32 %s92, 1
          %s183 = scalar_lea.sflag [#allocation7], %s182
          %s184 = sand.u32 %s92, 1
          %s185 = smul.addr %s184, 2
          %s186 = scalar_lea.vmem [#allocation6], %s185
          %s187 = smul.u32 2, %s27
          %s189 = ssub.s32 32, 32
          %190 = vsyncadd %s183, %s189
          %s191 = smul.addr %s26, 2
          %s192 = sadd.s32 %s187, %s191
          %s193 = smul.addr %s192, 16
          %s194 = scalar_lea.hbm %s2, %s193
          %s196 = sshll.u32 %s186, 4
          %s197 = int_to_ptr.vmem [resolvable:$true] %s196
          %199 = dma.hbm_to_vmem [thread:$0]  %s194, 32, %s197, %s183
        $region28: #{tpu_custom_call.1} parent=19 // pred_fallthru
          _
      $region20: #{tpu_custom_call.1} parent=5 // pred_fallthru
        _
      %p200 = scmp.le.s32.totalorder 1, %s19
      %p201 = scmp.lt.s32.totalorder %s19, 3
      %p202 = pnand %p200, %p201
      %p203 = pneg %p202
      // Predicated region
      $region29: #{tpu_custom_call.1} parent=5 // pred_check
        _
      $region30: #{tpu_custom_call.1} parent=5 // pred_check_branch
        %205 = sbr.rel (%p202) target = $region32
      $region31: #{tpu_custom_call.1} parent=5 // pred_region
        %s206 = ssub.s32 %s19, 1
        %s207 = sand.u32 %s67, 1
        %s208 = scalar_lea.sflag [#allocation4], %s207
        %s209 = sand.u32 %s67, 1
        %s210 = smul.addr %s209, 8
        %s211 = scalar_lea.vmem [#allocation3], %s210
        // Predicated region
        $region33: #{tpu_custom_call.1} parent=31 // pred_check
          %p212 = pneg %p80
        $region34: #{tpu_custom_call.1} parent=31 // pred_check_branch
          %214 = sbr.rel (%p212) target = $region36
        $region35: #{tpu_custom_call.1} parent=31 // pred_region
          %215 = dma.done %s208, 128
        $region36: #{tpu_custom_call.1} parent=31 // pred_fallthru
          _
        %s216 = sand.u32 %s95, 1
        %s217 = scalar_lea.sflag [#allocation7], %s216
        %s218 = sand.u32 %s95, 1
        %s219 = smul.addr %s218, 2
        %s220 = scalar_lea.vmem [#allocation6], %s219
        // Predicated region
        $region37: #{tpu_custom_call.1} parent=31 // pred_check
          %p221 = pneg %p108
        $region38: #{tpu_custom_call.1} parent=31 // pred_check_branch
          %223 = sbr.rel (%p221) target = $region40
        $region39: #{tpu_custom_call.1} parent=31 // pred_region
          %224 = dma.done %s217, 32
        $region40: #{tpu_custom_call.1} parent=31 // pred_fallthru
          _
        %p225 = pneg %p52
        %p226 = pneg %p49
        %s227 = sand.u32 %s67, 1
        %s228 = scalar_lea.sflag [#allocation4], %s227
        %s229 = sand.u32 %s67, 1
        %s230 = smul.addr %s229, 8
        %s231 = scalar_lea.vmem [#allocation3], %s230
        %p232 = pneg %p80
        %p233 = pneg %p77
        %s234 = sand.u32 %s95, 1
        %s235 = scalar_lea.sflag [#allocation7], %s234
        %s236 = sand.u32 %s95, 1
        %s237 = smul.addr %s236, 2
        %s238 = scalar_lea.vmem [#allocation6], %s237
        %p239 = pneg %p108
        %p240 = pneg %p105
        %p241 = pneg %p136
        %p242 = pneg %p133
        %s243 = sand.u32 %s123, 1
        %s244 = scalar_lea.sflag [#allocation5], %s243
        %s245 = sand.u32 %s123, 1
        %s246 = smul.addr %s245, 8
        %s247 = scalar_lea.vmem [#allocation8], %s246
        %s248 = smul.u32 2, %s29
        %s249 = smul.u32 2, %s29
        %s250 = smul.u32 2, %s29
        %s251 = sld [smem:[#allocation2]]
        %v252 = vld [vmem:[%s211] sm:$0xff]
        %v253 = vld [vmem:[%s220] sm:$0x3]
        %v254 = vstv %s251
        %v255 = vmul.f32 %v254, %v253
        %v257 = vlaneseq
        %v258 = vshrl.u32 %v257, 7
        %v259 = vsub.s32 0, %v258
        %v260 = vrot.slane %v255, %v259
        %v261 = vlaneseq
        %v262 = vshrl.u32 %v261, 7
        %v263 = vsub.s32 1, %v262
        %v264 = vrot.slane %v255, %v263
        %v265 = vcombine.low %v260, %v264
        %v267 = vadd.f32 %v252, %v265
        %268 = vst [vmem:[%s247] sm:$0xff] %v267
        %s269 = sand.u32 %s123, 1
        %s270 = scalar_lea.sflag [#allocation5], %s269
        %s271 = sand.u32 %s123, 1
        %s272 = smul.addr %s271, 8
        %s273 = scalar_lea.vmem [#allocation8], %s272
        // Predicated region
        $region41: #{tpu_custom_call.1} parent=31 // pred_check
          %p274 = pneg %p133
        $region42: #{tpu_custom_call.1} parent=31 // pred_check_branch
          %276 = sbr.rel (%p274) target = $region44
        $region43: #{tpu_custom_call.1} parent=31 // pred_region
          %s277 = smul.u32 2, %s29
          %s279 = ssub.s32 128, 128
          %280 = vsyncadd %s270, %s279
          %s281 = smul.addr %s28, 2
          %s282 = sadd.s32 %s277, %s281
          %s283 = smul.addr %s282, 64
          %s284 = scalar_lea.hbm %s3, %s283
          %s286 = sshll.u32 %s273, 4
          %s287 = int_to_ptr.vmem [resolvable:$true] %s286
          %289 = dma.vmem_to_hbm [thread:$0]  %s287, 128, %s284, %s270
        $region44: #{tpu_custom_call.1} parent=31 // pred_fallthru
          _
      $region32: #{tpu_custom_call.1} parent=5 // pred_fallthru
        _
      %p290 = scmp.le.s32.totalorder 2, %s19
      // Predicated region
      $region45: #{tpu_custom_call.1} parent=5 // pred_check
        %p291 = pneg %p290
      $region46: #{tpu_custom_call.1} parent=5 // pred_check_branch
        %293 = sbr.rel (%p291) target = $region48
      $region47: #{tpu_custom_call.1} parent=5 // pred_region
        %s294 = ssub.s32 %s19, 2
        // Predicated region
        $region49: #{tpu_custom_call.1} parent=47 // pred_check
          %p295 = pneg %p139
        $region50: #{tpu_custom_call.1} parent=47 // pred_check_branch
          %297 = sbr.rel (%p295) target = $region52
        $region51: #{tpu_custom_call.1} parent=47 // pred_region
          %s298 = sand.u32 %s124, 1
          %s299 = scalar_lea.sflag [#allocation5], %s298
          %s300 = sand.u32 %s124, 1
          %s301 = smul.addr %s300, 8
          %s302 = scalar_lea.vmem [#allocation8], %s301
          %303 = dma.done %s299, 128
        $region52: #{tpu_custom_call.1} parent=47 // pred_fallthru
          _
      $region48: #{tpu_custom_call.1} parent=5 // pred_fallthru
        _
    $region6: #{tpu_custom_call.1} parent=1 // loop_footer
      %s23 = sadd.s32 1, %s19
    $region7: #{tpu_custom_call.1} parent=1 // loop_footer_branch
      %18 = sbr.rel target = $region3
    $region8: #{tpu_custom_call.1} parent=1 // loop_exit
      _
    %304 = vsyncpa [#allocation4], 1
    %s305 = scalar_lea.sflag [#allocation4], 1
    %306 = vsyncpa %s305, 1
    %307 = vsyncpa [#allocation7], 1
    %s308 = scalar_lea.sflag [#allocation7], 1
    %309 = vsyncpa %s308, 1
    %310 = vsyncpa [#allocation5], 1
    %s311 = scalar_lea.sflag [#allocation5], 1
    %312 = vsyncpa %s311, 1

</llo_original>
